<compile_context>
chip_gen: v7x
topology: tpu7x:2x2x1
jax: 0.10.0
libtpu: 0.0.40
codegen_flags: <defaults>
</compile_context>

<pallas_src>
import functools

import jax
import jax.numpy as jnp
from jax.experimental import pallas as pl
from jax.experimental.pallas import tpu as pltpu


def _round_up(x: int, m: int) -> int:
    return ((x + m - 1) // m) * m


def _maybe_pad2d(a, rows_to: int, cols_to: int):
    r, c = a.shape
    if r == rows_to and c == cols_to:
        return a
    return jnp.pad(a, ((0, rows_to - r), (0, cols_to - c)))


def _adapter_kernel(x_ref, w1_ref, w2_ref, o_ref):
    x = x_ref[...]                                   # [tm, in_dim_p]   (input dtype)
    w1 = w1_ref[...]                                 # [in_dim_p, mid_dim_p] (compute dtype)
    w2 = w2_ref[...]                                 # [mid_dim_p, in_dim_p] (compute dtype)

    # fc1 on the MXU: operands in compute dtype, f32 accumulation.
    h = jnp.dot(x.astype(w1.dtype), w1, preferred_element_type=jnp.float32)

    # Exact GELU (erf form, torch.nn.GELU() default) — strictly f32 (VPU/EUP).
    h = 0.5 * h * (1.0 + jax.lax.erf(h * jnp.float32(0.7071067811865476)))

    # fc2 on the MXU + residual add in f32; single cast to the output dtype.
    y = jnp.dot(h.astype(w2.dtype), w2, preferred_element_type=jnp.float32)
    o_ref[...] = (x.astype(jnp.float32) + y).astype(o_ref.dtype)


@functools.partial(jax.jit, static_argnames=("tm", "compute_dtype"))
def adapter_forward(x, w1_t, w2_t, *, tm: int = 256, compute_dtype=None):
    """Adapter forward: x + gelu(x @ w1_t) @ w2_t.

    x:    [B, S, in_dim]
    w1_t: [in_dim, mid_dim]   (transpose of fc1.weight)
    w2_t: [mid_dim, in_dim]   (transpose of fc2.weight)
    compute_dtype: dtype for the MXU operands (e.g. jnp.bfloat16); GELU and the
                   residual always run in f32. None => keep the weight dtype.
    """
    B, S, in_dim = x.shape
    mid_dim = w1_t.shape[1]
    assert w1_t.shape == (in_dim, mid_dim)
    assert w2_t.shape == (mid_dim, in_dim)

    cdt = jnp.dtype(compute_dtype) if compute_dtype is not None else jnp.dtype(w1_t.dtype)
    x_itemsize = jnp.dtype(x.dtype).itemsize

    # Lane-dense padding: feature dims to multiples of 128 (zero pad = exact).
    in_dim_p = _round_up(in_dim, 128)
    mid_dim_p = _round_up(mid_dim, 128)

    # Row tile: big for MXU fill / low per-step overhead, but never bigger than
    # the (padded) row count; keep it a multiple of 8 sublanes.
    M = B * S
    tm = max(8, min(tm, _round_up(M, 8)))
    tm = _round_up(tm, 8)
    M_p = _round_up(M, tm)

    x2d = _maybe_pad2d(x.reshape(M, in_dim), M_p, in_dim_p)
    w1_p = _maybe_pad2d(w1_t, in_dim_p, mid_dim_p).astype(cdt)
    w2_p = _maybe_pad2d(w2_t, mid_dim_p, in_dim_p).astype(cdt)

    grid = (M_p // tm,)

    # VMEM budget: double-buffered x and out tiles, single-buffered weights,
    # f32 intermediates (h, y); 2x margin, capped at 64 MiB (v7x physical VMEM).
    vmem_need = (
        2 * tm * in_dim_p * x_itemsize          # x tiles (double-buffered)
        + 2 * tm * in_dim_p * x_itemsize        # out tiles (double-buffered)
        + in_dim_p * mid_dim_p * cdt.itemsize   # w1 (single-buffered, resident)
        + mid_dim_p * in_dim_p * cdt.itemsize   # w2 (single-buffered, resident)
        + tm * mid_dim_p * 4                    # h (f32)
        + tm * in_dim_p * 4                     # y (f32)
    )
    vmem_limit = int(min(64 * 1024 * 1024, max(2 * vmem_need, 8 * 1024 * 1024)))

    cost = pl.CostEstimate(
        flops=4 * M_p * in_dim_p * mid_dim_p,          # two matmuls
        transcendentals=M_p * mid_dim_p,               # erf per hidden element
        bytes_accessed=(M_p * in_dim_p * x_itemsize * 2
                        + in_dim_p * mid_dim_p * cdt.itemsize * 2),
    )

    out = pl.pallas_call(
        _adapter_kernel,
        out_shape=jax.ShapeDtypeStruct((M_p, in_dim_p), x.dtype),
        grid_spec=pltpu.PrefetchScalarGridSpec(
            num_scalar_prefetch=0,
            grid=grid,
            in_specs=[
                pl.BlockSpec((tm, in_dim_p), lambda i: (i, 0)),
                # Weights: whole array resident in VMEM, no pipelining buffers.
                pl.BlockSpec(memory_space=pltpu.MemorySpace.VMEM),
                pl.BlockSpec(memory_space=pltpu.MemorySpace.VMEM),
            ],
            out_specs=pl.BlockSpec((tm, in_dim_p), lambda i: (i, 0)),
        ),
        compiler_params=pltpu.CompilerParams(
            dimension_semantics=("parallel",),
            vmem_limit_bytes=vmem_limit,
        ),
        cost_estimate=cost,
    )(x2d, w1_p, w2_p)

    if M_p == M and in_dim_p == in_dim:
        return out.reshape(B, S, in_dim)
    return out[:M, :in_dim].reshape(B, S, in_dim)


def _reference(x, w1_t, w2_t):
    h = jnp.dot(x, w1_t)
    h = 0.5 * h * (1.0 + jax.lax.erf(h / jnp.sqrt(2.0)))
    return x + jnp.dot(h, w2_t)


if __name__ == "__main__":
    # Small shapes consistent with the module: x [batch, seq, in_dim]
    batch, seq, in_dim, mid_dim = 2, 8, 32, 16

    key = jax.random.PRNGKey(0)
    kx, k1, k2 = jax.random.split(key, 3)

    x = jax.random.normal(kx, (batch, seq, in_dim), dtype=jnp.float32)

    # Deterministic init matching PyTorch Linear default scale.
    # nn.Linear weight shapes: fc1 [mid_dim, in_dim], fc2 [in_dim, mid_dim];
    # we store the transposes so the kernel does x @ W^T directly.
    bound1 = 1.0 / jnp.sqrt(in_dim)
    bound2 = 1.0 / jnp.sqrt(mid_dim)
    w1_t = jax.random.uniform(k1, (in_dim, mid_dim), jnp.float32, -bound1, bound1)
    w2_t = jax.random.uniform(k2, (mid_dim, in_dim), jnp.float32, -bound2, bound2)

    y_ref = _reference(x, w1_t, w2_t)

    # f32 path (exact).
    y = adapter_forward(x, w1_t, w2_t)
    y = jax.block_until_ready(y)
    assert y.shape == x.shape
    assert jnp.allclose(y, y_ref, atol=1e-5, rtol=1e-5), "f32 mismatch vs reference"

    # bf16 MXU path (f32 GELU/residual/accumulation) — looser tolerance.
    y_bf16 = adapter_forward(x, w1_t, w2_t, compute_dtype=jnp.bfloat16)
    y_bf16 = jax.block_until_ready(y_bf16)
    assert jnp.allclose(y_bf16, y_ref, atol=3e-2, rtol=3e-2), "bf16 mismatch vs reference"

    print("KERNEL_OK")
</pallas_src>

<mosaic_0001>
module attributes {stable_mosaic.version = 11 : i64} {
  func.func @_adapter_kernel(%arg0: i32, %arg1: memref<16x128xf32, #tpu.memory_space<vmem>>, %arg2: memref<128x128xf32, #tpu.memory_space<vmem>>, %arg3: memref<128x128xf32, #tpu.memory_space<vmem>>, %arg4: memref<16x128xf32, #tpu.memory_space<vmem>>) attributes {dimension_semantics = [#tpu.dimension_semantics<parallel>], iteration_bounds = array<i64: 1>, scalar_prefetch = 0 : i64, scratch_operands = 0 : i64, tpu.core_type = #tpu.core_type<tc>, window_params = [{transform_indices = @transform_0, window_bounds = array<i64: 16, 128>}, {pipeline_mode = #tpu.pipeline_mode<synchronous>, transform_indices = @transform_1, window_bounds = array<i64: 128, 128>}, {pipeline_mode = #tpu.pipeline_mode<synchronous>, transform_indices = @transform_2, window_bounds = array<i64: 128, 128>}, {transform_indices = @transform_3, window_bounds = array<i64: 16, 128>}]} {
    %c0 = arith.constant 0 : index
    %c0_0 = arith.constant 0 : index
    %0 = vector.load %arg1[%c0, %c0_0] : memref<16x128xf32, #tpu.memory_space<vmem>>, vector<16x128xf32>
    %c0_1 = arith.constant 0 : index
    %c0_2 = arith.constant 0 : index
    %1 = vector.load %arg2[%c0_1, %c0_2] : memref<128x128xf32, #tpu.memory_space<vmem>>, vector<128x128xf32>
    %c0_3 = arith.constant 0 : index
    %c0_4 = arith.constant 0 : index
    %2 = vector.load %arg3[%c0_3, %c0_4] : memref<128x128xf32, #tpu.memory_space<vmem>>, vector<128x128xf32>
    %cst = arith.constant dense<0.000000e+00> : vector<16x128xf32>
    %3 = tpu.matmul %0, %1, %cst {dimension_numbers = #tpu.dot_dimension_numbers<[1], [0], [0], [1], [0, 0, 1, 1], [], []>} : vector<16x128xf32>, vector<128x128xf32>, vector<16x128xf32> -> vector<16x128xf32>
    %cst_5 = arith.constant 5.000000e-01 : f32
    %4 = vector.broadcast %cst_5 : f32 to vector<16x128xf32>
    %5 = arith.mulf %4, %3 : vector<16x128xf32>
    %cst_6 = arith.constant 0.707106769 : f32
    %6 = vector.broadcast %cst_6 : f32 to vector<16x128xf32>
    %7 = arith.mulf %3, %6 : vector<16x128xf32>
    %8 = math.erf %7 : vector<16x128xf32>
    %cst_7 = arith.constant 1.000000e+00 : f32
    %9 = vector.broadcast %cst_7 : f32 to vector<16x128xf32>
    %10 = arith.addf %9, %8 : vector<16x128xf32>
    %11 = arith.mulf %5, %10 : vector<16x128xf32>
    %cst_8 = arith.constant dense<0.000000e+00> : vector<16x128xf32>
    %12 = tpu.matmul %11, %2, %cst_8 {dimension_numbers = #tpu.dot_dimension_numbers<[1], [0], [0], [1], [0, 0, 1, 1], [], []>} : vector<16x128xf32>, vector<128x128xf32>, vector<16x128xf32> -> vector<16x128xf32>
    %13 = arith.addf %0, %12 : vector<16x128xf32>
    %c0_9 = arith.constant 0 : index
    %c0_10 = arith.constant 0 : index
    %14 = vector.load %arg4[%c0_9, %c0_10] : memref<16x128xf32, #tpu.memory_space<vmem>>, vector<16x128xf32>
    tpu.vector_store %arg4[%c0_9, %c0_10], %13 {strides = array<i32>} : memref<16x128xf32, #tpu.memory_space<vmem>>, vector<16x128xf32>,
    return
  }
  func.func @transform_0(%arg0: i32) -> (i32, i32) {
    %c0_i32 = arith.constant 0 : i32
    %c0_i32_0 = arith.constant 0 : i32
    return %arg0, %c0_i32 : i32, i32
  }
  func.func @transform_1(%arg0: i32) -> (i32, i32) {
    %c0_i32 = arith.constant 0 : i32
    %c0_i32_0 = arith.constant 0 : i32
    %c0_i32_1 = arith.constant 0 : i32
    return %c0_i32, %c0_i32_0 : i32, i32
  }
  func.func @transform_2(%arg0: i32) -> (i32, i32) {
    %c0_i32 = arith.constant 0 : i32
    %c0_i32_0 = arith.constant 0 : i32
    %c0_i32_1 = arith.constant 0 : i32
    return %c0_i32, %c0_i32_0 : i32, i32
  }
  func.func @transform_3(%arg0: i32) -> (i32, i32) {
    %c0_i32 = arith.constant 0 : i32
    %c0_i32_0 = arith.constant 0 : i32
    return %arg0, %c0_i32 : i32, i32
  }
}

</mosaic_0001>

<llo_original>
// kernel: adapter_forward.1
$region0: #{adapter_forward.1}
  #allocation0 [shape = 'u32[]', space=smem, size = 0x4, offset = 0x4, fixed_abs, tag = 'smem constant byte address 0x4 - core index']
  #allocation1 [shape = 'u32[144,128]{1,0:T(1,128)}', space=vmem, size = 0x12000, scoped, tag = 'internal scratch']
  %s0 = inlined_call_operand.vmem [shape: f32[16,128], index: 0, kind: input, shape index: {}]
  %s1 = inlined_call_operand.vmem [shape: f32[128,128], index: 1, kind: input, shape index: {}]
  %s2 = inlined_call_operand.vmem [shape: f32[128,128], index: 2, kind: input, shape index: {}]
  %s3 = inlined_call_operand.vmem [shape: f32[16,128], index: 3, kind: output, shape index: {}]
  %s4 = sld [smem:[#allocation0]]
  $region22: #{adapter_forward.1} parent=0
    _
  %s6 = ssub.s32 1, %s4
  %s7 = scalar_select 0, %s6, %s4
  // Predicated region
  $region2: #{adapter_forward.1} parent=0 // pred_check
    _
  $region3: #{adapter_forward.1} parent=0 // pred_check_branch
    %9 = sbr.rel (0) target = $region5
  $region4: #{adapter_forward.1} parent=0 // pred_region
    _
  $region5: #{adapter_forward.1} parent=0 // pred_fallthru
    _
  // Predicated region
  $region6: #{adapter_forward.1} parent=0 // pred_check
    _
  $region7: #{adapter_forward.1} parent=0 // pred_check_branch
    %11 = sbr.rel (0) target = $region9
  $region8: #{adapter_forward.1} parent=0 // pred_region
    _
  $region9: #{adapter_forward.1} parent=0 // pred_fallthru
    _
  // Predicated region
  $region10: #{adapter_forward.1} parent=0 // pred_check
    _
  $region11: #{adapter_forward.1} parent=0 // pred_check_branch
    %13 = sbr.rel (0) target = $region13
  $region12: #{adapter_forward.1} parent=0 // pred_region
    _
  $region13: #{adapter_forward.1} parent=0 // pred_fallthru
    _
  %v14 = vld [vmem:[%s0] sm:$0xff]
  %v15 = vld [vmem:[%s0 + $0x8] sm:$0xff]
  %v16 = vld [vmem:[%s1] sm:$0xff]
  %v17 = vld [vmem:[%s1 + $0x8] sm:$0xff]
  %v18 = vld [vmem:[%s1 + $0x10] sm:$0xff]
  %v19 = vld [vmem:[%s1 + $0x18] sm:$0xff]
  %v20 = vld [vmem:[%s1 + $0x20] sm:$0xff]
  %v21 = vld [vmem:[%s1 + $0x28] sm:$0xff]
  %v22 = vld [vmem:[%s1 + $0x30] sm:$0xff]
  %v23 = vld [vmem:[%s1 + $0x38] sm:$0xff]
  %v24 = vld [vmem:[%s1 + $0x40] sm:$0xff]
  %v25 = vld [vmem:[%s1 + $0x48] sm:$0xff]
  %v26 = vld [vmem:[%s1 + $0x50] sm:$0xff]
  %v27 = vld [vmem:[%s1 + $0x58] sm:$0xff]
  %v28 = vld [vmem:[%s1 + $0x60] sm:$0xff]
  %v29 = vld [vmem:[%s1 + $0x68] sm:$0xff]
  %v30 = vld [vmem:[%s1 + $0x70] sm:$0xff]
  %v31 = vld [vmem:[%s1 + $0x78] sm:$0xff]
  %v32 = vld [vmem:[%s2] sm:$0xff]
  %v33 = vld [vmem:[%s2 + $0x8] sm:$0xff]
  %v34 = vld [vmem:[%s2 + $0x10] sm:$0xff]
  %v35 = vld [vmem:[%s2 + $0x18] sm:$0xff]
  %v36 = vld [vmem:[%s2 + $0x20] sm:$0xff]
  %v37 = vld [vmem:[%s2 + $0x28] sm:$0xff]
  %v38 = vld [vmem:[%s2 + $0x30] sm:$0xff]
  %v39 = vld [vmem:[%s2 + $0x38] sm:$0xff]
  %v40 = vld [vmem:[%s2 + $0x40] sm:$0xff]
  %v41 = vld [vmem:[%s2 + $0x48] sm:$0xff]
  %v42 = vld [vmem:[%s2 + $0x50] sm:$0xff]
  %v43 = vld [vmem:[%s2 + $0x58] sm:$0xff]
  %v44 = vld [vmem:[%s2 + $0x60] sm:$0xff]
  %v45 = vld [vmem:[%s2 + $0x68] sm:$0xff]
  %v46 = vld [vmem:[%s2 + $0x70] sm:$0xff]
  %v47 = vld [vmem:[%s2 + $0x78] sm:$0xff]
  %48 = vmatprep.subr.mxu0 0.0
  %49 = vmatpush1.msra.mxu0 %v16
  %50 = vmatprep.subr.mxu0 0.0
  %51 = vmatpush1.msra.mxu0 %v17
  %52 = vmatprep.subr.mxu0 0.0
  %53 = vmatpush1.msra.mxu0 %v18
  %54 = vmatprep.subr.mxu0 0.0
  %55 = vmatpush1.msra.mxu0 %v19
  %56 = vmatprep.subr.mxu0 0.0
  %57 = vmatpush1.msra.mxu0 %v20
  %58 = vmatprep.subr.mxu0 0.0
  %59 = vmatpush1.msra.mxu0 %v21
  %60 = vmatprep.subr.mxu0 0.0
  %61 = vmatpush1.msra.mxu0 %v22
  %62 = vmatprep.subr.mxu0 0.0
  %63 = vmatpush1.msra.mxu0 %v23
  %64 = vmatprep.subr.mxu0 0.0
  %65 = vmatpush1.msra.mxu0 %v24
  %66 = vmatprep.subr.mxu0 0.0
  %67 = vmatpush1.msra.mxu0 %v25
  %68 = vmatprep.subr.mxu0 0.0
  %69 = vmatpush1.msra.mxu0 %v26
  %70 = vmatprep.subr.mxu0 0.0
  %71 = vmatpush1.msra.mxu0 %v27
  %72 = vmatprep.subr.mxu0 0.0
  %73 = vmatpush1.msra.mxu0 %v28
  %74 = vmatprep.subr.mxu0 0.0
  %75 = vmatpush1.msra.mxu0 %v29
  %76 = vmatprep.subr.mxu0 0.0
  %77 = vmatpush1.msra.mxu0 %v30
  %78 = vmatprep.subr.mxu0 0.0
  %79 = vmatpush1.msra.mxu0 %v31
  %80 = vmatprep.subr.mxu0 0.0
  %81 = vmatpush1.msra.mxu0 0.0
  %82 = vmatprep.subr.mxu0 0.0
  %83 = vmatpush1.msra.mxu0 0.0
  %84 = vmatprep.subr.mxu0 0.0
  %85 = vmatpush1.msra.mxu0 0.0
  %86 = vmatprep.subr.mxu0 0.0
  %87 = vmatpush1.msra.mxu0 0.0
  %88 = vmatprep.subr.mxu0 0.0
  %89 = vmatpush1.msra.mxu0 0.0
  %90 = vmatprep.subr.mxu0 0.0
  %91 = vmatpush1.msra.mxu0 0.0
  %92 = vmatprep.subr.mxu0 0.0
  %93 = vmatpush1.msra.mxu0 0.0
  %94 = vmatprep.subr.mxu0 0.0
  %95 = vmatpush1.msra.mxu0 0.0
  %96 = vmatprep.subr.mxu0 0.0
  %97 = vmatpush1.msra.mxu0 0.0
  %98 = vmatprep.subr.mxu0 0.0
  %99 = vmatpush1.msra.mxu0 0.0
  %100 = vmatprep.subr.mxu0 0.0
  %101 = vmatpush1.msra.mxu0 0.0
  %102 = vmatprep.subr.mxu0 0.0
  %103 = vmatpush1.msra.mxu0 0.0
  %104 = vmatprep.subr.mxu0 0.0
  %105 = vmatpush1.msra.mxu0 0.0
  %106 = vmatprep.subr.mxu0 0.0
  %107 = vmatpush1.msra.mxu0 0.0
  %108 = vmatprep.subr.mxu0 0.0
  %109 = vmatpush1.msra.mxu0 0.0
  %110 = vmatprep.subr.mxu0 0.0
  %111 = vmatpush1.msra.mxu0 0.0
  %112 = vmatprep.mubr.f32.mxu0 0.0
  %113 = vmatmul.mubr.f32.gmra.mrb[0].mxu0 %v14
  %v114 = vpop.f32.mrb[0].mxu0
  %v115 = vadd.f32 0.0, %v114
  %v116 = vpop.f32.mrb[0].mxu0
  %117 = vmatprep.mubr.f32.mxu0 0.0
  %118 = vmatmul.mubr.f32.gmra.mrb[0].mxu0 %v15
  %v119 = vpop.f32.mrb[0].mxu0
  %v120 = vadd.f32 0.0, %v119
  %v121 = vpop.f32.mrb[0].mxu0
  %122 = vdwg.mxu0
  %v123 = vmul.f32 %v115, 0.5
  %v124 = vmul.f32 %v120, 0.5
  %v125 = vmul.f32 %v115, 0.70710677
  %v126 = vmul.f32 %v120, 0.70710677
  %v127 = verf.f32.pop %v125
  %v128 = verf.f32.pop %v126
  %v129 = vadd.f32 %v127, 1.0
  %v130 = vadd.f32 %v128, 1.0
  %v131 = vmul.f32 %v123, %v129
  %v132 = vmul.f32 %v124, %v130
  %133 = vmatprep.subr.mxu0 0.0
  %134 = vmatpush1.msra.mxu0 %v32
  %135 = vmatprep.subr.mxu0 0.0
  %136 = vmatpush1.msra.mxu0 %v33
  %137 = vmatprep.subr.mxu0 0.0
  %138 = vmatpush1.msra.mxu0 %v34
  %139 = vmatprep.subr.mxu0 0.0
  %140 = vmatpush1.msra.mxu0 %v35
  %141 = vmatprep.subr.mxu0 0.0
  %142 = vmatpush1.msra.mxu0 %v36
  %143 = vmatprep.subr.mxu0 0.0
  %144 = vmatpush1.msra.mxu0 %v37
  %145 = vmatprep.subr.mxu0 0.0
  %146 = vmatpush1.msra.mxu0 %v38
  %147 = vmatprep.subr.mxu0 0.0
  %148 = vmatpush1.msra.mxu0 %v39
  %149 = vmatprep.subr.mxu0 0.0
  %150 = vmatpush1.msra.mxu0 %v40
  %151 = vmatprep.subr.mxu0 0.0
  %152 = vmatpush1.msra.mxu0 %v41
  %153 = vmatprep.subr.mxu0 0.0
  %154 = vmatpush1.msra.mxu0 %v42
  %155 = vmatprep.subr.mxu0 0.0
  %156 = vmatpush1.msra.mxu0 %v43
  %157 = vmatprep.subr.mxu0 0.0
  %158 = vmatpush1.msra.mxu0 %v44
  %159 = vmatprep.subr.mxu0 0.0
  %160 = vmatpush1.msra.mxu0 %v45
  %161 = vmatprep.subr.mxu0 0.0
  %162 = vmatpush1.msra.mxu0 %v46
  %163 = vmatprep.subr.mxu0 0.0
  %164 = vmatpush1.msra.mxu0 %v47
  %165 = vmatprep.subr.mxu0 0.0
  %166 = vmatpush1.msra.mxu0 0.0
  %167 = vmatprep.subr.mxu0 0.0
  %168 = vmatpush1.msra.mxu0 0.0
  %169 = vmatprep.subr.mxu0 0.0
  %170 = vmatpush1.msra.mxu0 0.0
  %171 = vmatprep.subr.mxu0 0.0
  %172 = vmatpush1.msra.mxu0 0.0
  %173 = vmatprep.subr.mxu0 0.0
  %174 = vmatpush1.msra.mxu0 0.0
  %175 = vmatprep.subr.mxu0 0.0
  %176 = vmatpush1.msra.mxu0 0.0
  %177 = vmatprep.subr.mxu0 0.0
  %178 = vmatpush1.msra.mxu0 0.0
  %179 = vmatprep.subr.mxu0 0.0
  %180 = vmatpush1.msra.mxu0 0.0
  %181 = vmatprep.subr.mxu0 0.0
  %182 = vmatpush1.msra.mxu0 0.0
  %183 = vmatprep.subr.mxu0 0.0
  %184 = vmatpush1.msra.mxu0 0.0
  %185 = vmatprep.subr.mxu0 0.0
  %186 = vmatpush1.msra.mxu0 0.0
  %187 = vmatprep.subr.mxu0 0.0
  %188 = vmatpush1.msra.mxu0 0.0
  %189 = vmatprep.subr.mxu0 0.0
  %190 = vmatpush1.msra.mxu0 0.0
  %191 = vmatprep.subr.mxu0 0.0
  %192 = vmatpush1.msra.mxu0 0.0
  %193 = vmatprep.subr.mxu0 0.0
  %194 = vmatpush1.msra.mxu0 0.0
  %195 = vmatprep.subr.mxu0 0.0
  %196 = vmatpush1.msra.mxu0 0.0
  %197 = vmatprep.mubr.f32.mxu0 0.0
  %198 = vmatmul.mubr.f32.gmra.mrb[0].mxu0 %v131
  %v199 = vpop.f32.mrb[0].mxu0
  %v200 = vadd.f32 0.0, %v199
  %v201 = vpop.f32.mrb[0].mxu0
  %202 = vmatprep.mubr.f32.mxu0 0.0
  %203 = vmatmul.mubr.f32.gmra.mrb[0].mxu0 %v132
  %v204 = vpop.f32.mrb[0].mxu0
  %v205 = vadd.f32 0.0, %v204
  %v206 = vpop.f32.mrb[0].mxu0
  %207 = vdwg.mxu0
  %v208 = vadd.f32 %v14, %v200
  %v209 = vadd.f32 %v15, %v205
  %210 = vst [vmem:[%s3] sm:$0xff] %v208
  %211 = vst [vmem:[%s3 + $0x8] sm:$0xff] %v209
  // Predicated region
  $region14: #{adapter_forward.1} parent=0 // pred_check
    _
  $region15: #{adapter_forward.1} parent=0 // pred_check_branch
    %213 = sbr.rel (0) target = $region17
  $region16: #{adapter_forward.1} parent=0 // pred_region
    _
  $region17: #{adapter_forward.1} parent=0 // pred_fallthru
    _
  // Predicated region
  $region18: #{adapter_forward.1} parent=0 // pred_check
    _
  $region19: #{adapter_forward.1} parent=0 // pred_check_branch
    %215 = sbr.rel (0) target = $region21
  $region20: #{adapter_forward.1} parent=0 // pred_region
    _
  $region21: #{adapter_forward.1} parent=0 // pred_fallthru
    _

</llo_original>
